<compile_context>
chip_gen: v7x
topology: tpu7x:2x2x1
jax: 0.10.0
libtpu: 0.0.40
codegen_flags: <defaults>
</compile_context>

<pallas_src>
import jax
import jax.numpy as jnp
from jax.experimental import pallas as pl
from jax.experimental.pallas import tpu as pltpu


# ---------------------------------------------------------------------------
# Kernel
# ---------------------------------------------------------------------------
def _mlp_kernel(x_ref, w1_ref, b1_ref, w2_ref, b2_ref, w3_ref, b3_ref,
                o_ref, h1_acc):
    k = pl.program_id(1)

    @pl.when(k == 0)
    def _():
        h1_acc[...] = jnp.zeros_like(h1_acc)

    # Layer-1 partial product for this K tile (bf16 MXU, f32 accumulation).
    h1_acc[...] += jnp.dot(x_ref[...], w1_ref[...],
                           preferred_element_type=jnp.float32)

    @pl.when(k == pl.num_programs(1) - 1)
    def _():
        h1 = jnp.maximum(h1_acc[...] + b1_ref[...], 0.0)           # BN-folded + ReLU
        h2 = jnp.dot(h1.astype(jnp.bfloat16), w2_ref[...],
                     preferred_element_type=jnp.float32) + b2_ref[...]
        h2 = jnp.maximum(h2, 0.0)                                   # BN-folded + ReLU
        o_ref[...] = (jnp.dot(h2.astype(jnp.bfloat16), w3_ref[...],
                              preferred_element_type=jnp.float32)
                      + b3_ref[...]).astype(o_ref.dtype)


# ---------------------------------------------------------------------------
# Wrapper
# ---------------------------------------------------------------------------
def _round_up(x, m):
    return ((x + m - 1) // m) * m


def _choose_k_tile(n_pad, max_tk):
    """Largest multiple of 128 that divides n_pad and is <= max_tk."""
    if n_pad <= max_tk:
        return n_pad
    tk = max(128, (max_tk // 128) * 128)
    while tk > 128 and n_pad % tk != 0:
        tk -= 128
    return tk


def v_inference_lyr_pallas(x, params, *, tb=None, max_tk=512):
    """x: (B, seq_len, feature_num) float32. Returns (B, feature_num) float32."""
    B = x.shape[0]
    x2d = x.reshape(B, -1).astype(jnp.float32)        # matches torch reshape(batch, -1)
    n = x2d.shape[1]
    w1, b1, w2, b2, w3, b3 = params
    h1_dim, h2_dim, out_dim = w1.shape[1], w2.shape[1], w3.shape[1]

    # Lane-dense padding for narrow feature dims; sublane-aligned batch tile.
    n_p = _round_up(n, 128)
    h1_p = _round_up(h1_dim, 128)
    h2_p = _round_up(h2_dim, 128)
    out_p = _round_up(out_dim, 128)

    if tb is None:
        tb = min(128, _round_up(B, 8))
    tb = max(8, _round_up(tb, 8))
    b_p = _round_up(B, tb)
    tk = _choose_k_tile(n_p, max_tk)

    def pad2(a, r, c, dtype):
        return jnp.pad(a, ((0, r - a.shape[0]), (0, c - a.shape[1]))).astype(dtype)

    # bf16 weights/activations (halve HBM traffic, native MXU path); f32 biases.
    xp  = pad2(x2d, b_p, n_p, jnp.bfloat16)
    w1p = pad2(w1, n_p, h1_p, jnp.bfloat16)
    w2p = pad2(w2, h1_p, h2_p, jnp.bfloat16)
    w3p = pad2(w3, h2_p, out_p, jnp.bfloat16)
    b1p = pad2(b1, 1, h1_p, jnp.float32)
    b2p = pad2(b2, 1, h2_p, jnp.float32)
    b3p = pad2(b3, 1, out_p, jnp.float32)

    grid = (b_p // tb, n_p // tk)

    grid_spec = pltpu.PrefetchScalarGridSpec(
        num_scalar_prefetch=0,
        grid=grid,
        in_specs=[
            pl.BlockSpec((tb, tk),      lambda i, k: (i, k)),   # x tile (pipelined)
            pl.BlockSpec((tk, h1_p),    lambda i, k: (k, 0)),   # w1 K-tile (streamed)
            pl.BlockSpec((1, h1_p),     lambda i, k: (0, 0)),   # b1 resident
            pl.BlockSpec((h1_p, h2_p),  lambda i, k: (0, 0)),   # w2 resident
            pl.BlockSpec((1, h2_p),     lambda i, k: (0, 0)),   # b2 resident
            pl.BlockSpec((h2_p, out_p), lambda i, k: (0, 0)),   # w3 resident
            pl.BlockSpec((1, out_p),    lambda i, k: (0, 0)),   # b3 resident
        ],
        out_specs=pl.BlockSpec((tb, out_p), lambda i, k: (i, 0)),
        scratch_shapes=[pltpu.VMEM((tb, h1_p), jnp.float32)],   # layer-1 accumulator
    )

    out_padded = pl.pallas_call(
        _mlp_kernel,
        out_shape=jax.ShapeDtypeStruct((b_p, out_p), jnp.float32),
        grid_spec=grid_spec,
        compiler_params=pltpu.CompilerParams(
            dimension_semantics=("parallel", "arbitrary"),
            vmem_limit_bytes=48 * 1024 * 1024,
        ),
    )(xp, w1p, b1p, w2p, b2p, w3p, b3p)

    return out_padded[:B, :out_dim]


# ---------------------------------------------------------------------------
# Deterministic parameter construction (synthetic; mirrors nn.Linear /
# nn.BatchNorm1d shapes) + BN folding (inference semantics).
# ---------------------------------------------------------------------------
def _linear_init(key, fan_in, fan_out):
    kw, kb = jax.random.split(key)
    bound = 1.0 / jnp.sqrt(float(fan_in))
    w = jax.random.uniform(kw, (fan_in, fan_out), jnp.float32, -bound, bound)
    b = jax.random.uniform(kb, (1, fan_out), jnp.float32, -bound, bound)
    return w, b


def _bn_params(key, dim, eps=1e-5):
    kg, kb, km, kv = jax.random.split(key, 4)
    gamma = 1.0 + 0.1 * jax.random.normal(kg, (dim,), jnp.float32)
    beta = 0.1 * jax.random.normal(kb, (dim,), jnp.float32)
    mean = 0.1 * jax.random.normal(km, (dim,), jnp.float32)
    var = jnp.abs(jax.random.normal(kv, (dim,), jnp.float32)) + 0.5
    return gamma, beta, mean, var, eps


def _fold_bn_into_linear(w, b, bn):
    gamma, beta, mean, var, eps = bn
    s = gamma / jnp.sqrt(var + eps)              # per-output scale
    w_f = w * s[None, :]
    b_f = (b * s[None, :]) + (beta - s * mean)[None, :]
    return w_f, b_f


def make_params(seq_len, feature_num, ratio, key):
    n = int(seq_len * ratio) * feature_num
    h1 = n // 4
    h2 = n // 8
    k = jax.random.split(key, 5)
    w1, b1 = _linear_init(k[0], n, h1)
    w2, b2 = _linear_init(k[1], h1, h2)
    w3, b3 = _linear_init(k[2], h2, feature_num)
    w1, b1 = _fold_bn_into_linear(w1, b1, _bn_params(k[3], h1))
    w2, b2 = _fold_bn_into_linear(w2, b2, _bn_params(k[4], h2))
    return (w1, b1, w2, b2, w3, b3)


def _reference_bf16(x, params):
    """f32 reference with inputs/weights rounded to bf16 (matches MXU semantics)."""
    w1, b1, w2, b2, w3, b3 = params
    bf = lambda a: a.astype(jnp.bfloat16).astype(jnp.float32)
    hp = jax.lax.Precision.HIGHEST
    h = bf(x.reshape(x.shape[0], -1))
    h = jnp.maximum(jnp.dot(h, bf(w1), precision=hp) + b1, 0.0)
    h = jnp.maximum(jnp.dot(bf(h), bf(w2), precision=hp) + b2, 0.0)
    return jnp.dot(bf(h), bf(w3), precision=hp) + b3


if __name__ == "__main__":
    seq_len, feature_num, ratio = 32, 8, 1.0     # -> n=256, hidden1=64, hidden2=32
    batch = 16

    key = jax.random.PRNGKey(0)
    kx, kp = jax.random.split(key)
    x = jax.random.normal(kx, (batch, seq_len, feature_num), jnp.float32)
    params = make_params(seq_len, feature_num, ratio, kp)

    # Small explicit tiles: exercises both grid axes (2 batch tiles x 2 K tiles).
    out_tiled = jax.block_until_ready(
        v_inference_lyr_pallas(x, params, tb=8, max_tk=128))
    # Auto tiling (single tile at these toy shapes).
    out_auto = jax.block_until_ready(v_inference_lyr_pallas(x, params))

    ref = _reference_bf16(x, params)
    assert out_tiled.shape == (batch, feature_num)
    assert out_auto.shape == (batch, feature_num)
    assert jnp.allclose(out_tiled, ref, atol=1e-3, rtol=1e-3), "tiled mismatch vs ref"
    assert jnp.allclose(out_auto, ref, atol=1e-3, rtol=1e-3), "auto mismatch vs ref"
    print("KERNEL_OK")
</pallas_src>

<mosaic_0001>
module attributes {stable_mosaic.version = 11 : i64} {
  func.func @_mlp_kernel(%arg0: i32, %arg1: i32, %arg2: memref<8x128xbf16, #tpu.memory_space<vmem>>, %arg3: memref<128x128xbf16, #tpu.memory_space<vmem>>, %arg4: memref<1x128xf32, #tpu.memory_space<vmem>>, %arg5: memref<128x128xbf16, #tpu.memory_space<vmem>>, %arg6: memref<1x128xf32, #tpu.memory_space<vmem>>, %arg7: memref<128x128xbf16, #tpu.memory_space<vmem>>, %arg8: memref<1x128xf32, #tpu.memory_space<vmem>>, %arg9: memref<8x128xf32, #tpu.memory_space<vmem>>, %arg10: memref<8x128xf32, #tpu.memory_space<vmem>>) attributes {dimension_semantics = [#tpu.dimension_semantics<parallel>, #tpu.dimension_semantics<arbitrary>], iteration_bounds = array<i64: 2, 2>, scalar_prefetch = 0 : i64, scratch_operands = 1 : i64, tpu.core_type = #tpu.core_type<tc>, window_params = [{transform_indices = @transform_0, window_bounds = array<i64: 8, 128>}, {transform_indices = @transform_1, window_bounds = array<i64: 128, 128>}, {pipeline_mode = #tpu.pipeline_mode<synchronous>, transform_indices = @transform_2, window_bounds = array<i64: 1, 128>}, {pipeline_mode = #tpu.pipeline_mode<synchronous>, transform_indices = @transform_3, window_bounds = array<i64: 128, 128>}, {pipeline_mode = #tpu.pipeline_mode<synchronous>, transform_indices = @transform_4, window_bounds = array<i64: 1, 128>}, {pipeline_mode = #tpu.pipeline_mode<synchronous>, transform_indices = @transform_5, window_bounds = array<i64: 128, 128>}, {pipeline_mode = #tpu.pipeline_mode<synchronous>, transform_indices = @transform_6, window_bounds = array<i64: 1, 128>}, {transform_indices = @transform_7, window_bounds = array<i64: 8, 128>}]} {
    %c0_i32 = arith.constant 0 : i32
    %0 = arith.cmpi eq, %arg1, %c0_i32 : i32
    %1 = arith.extui %0 : i1 to i32
    %c0_i32_0 = arith.constant 0 : i32
    %2 = arith.cmpi ne, %1, %c0_i32_0 : i32
    scf.if %2 {
      %cst_9 = arith.constant 0.000000e+00 : f32
      %12 = vector.broadcast %cst_9 : f32 to vector<8x128xf32>
      %c0_10 = arith.constant 0 : index
      %c0_11 = arith.constant 0 : index
      %13 = vector.load %arg10[%c0_10, %c0_11] : memref<8x128xf32, #tpu.memory_space<vmem>>, vector<8x128xf32>
      tpu.vector_store %arg10[%c0_10, %c0_11], %12 {strides = array<i32>} : memref<8x128xf32, #tpu.memory_space<vmem>>, vector<8x128xf32>,
    } else {
    }
    %c0 = arith.constant 0 : index
    %c0_1 = arith.constant 0 : index
    %3 = vector.load %arg10[%c0, %c0_1] : memref<8x128xf32, #tpu.memory_space<vmem>>, vector<8x128xf32>
    %c0_2 = arith.constant 0 : index
    %c0_3 = arith.constant 0 : index
    %4 = vector.load %arg2[%c0_2, %c0_3] : memref<8x128xbf16, #tpu.memory_space<vmem>>, vector<8x128xbf16>
    %c0_4 = arith.constant 0 : index
    %c0_5 = arith.constant 0 : index
    %5 = vector.load %arg3[%c0_4, %c0_5] : memref<128x128xbf16, #tpu.memory_space<vmem>>, vector<128x128xbf16>
    %cst = arith.constant dense<0.000000e+00> : vector<8x128xf32>
    %6 = tpu.matmul %4, %5, %cst {dimension_numbers = #tpu.dot_dimension_numbers<[1], [0], [0], [1], [0, 0, 1, 1], [], []>} : vector<8x128xbf16>, vector<128x128xbf16>, vector<8x128xf32> -> vector<8x128xf32>
    %7 = arith.addf %3, %6 : vector<8x128xf32>
    %c0_6 = arith.constant 0 : index
    %c0_7 = arith.constant 0 : index
    %8 = vector.load %arg10[%c0_6, %c0_7] : memref<8x128xf32, #tpu.memory_space<vmem>>, vector<8x128xf32>
    tpu.vector_store %arg10[%c0_6, %c0_7], %7 {strides = array<i32>} : memref<8x128xf32, #tpu.memory_space<vmem>>, vector<8x128xf32>,
    %c1_i32 = arith.constant 1 : i32
    %9 = arith.cmpi eq, %arg1, %c1_i32 : i32
    %10 = arith.extui %9 : i1 to i32
    %c0_i32_8 = arith.constant 0 : i32
    %11 = arith.cmpi ne, %10, %c0_i32_8 : i32
    scf.if %11 {
      %c0_9 = arith.constant 0 : index
      %c0_10 = arith.constant 0 : index
      %12 = vector.load %arg10[%c0_9, %c0_10] : memref<8x128xf32, #tpu.memory_space<vmem>>, vector<8x128xf32>
      %c0_11 = arith.constant 0 : index
      %c0_12 = arith.constant 0 : index
      %13 = vector.load %arg4[%c0_11, %c0_12] : memref<1x128xf32, #tpu.memory_space<vmem>>, vector<1x128xf32>
      %14 = vector.broadcast %13 : vector<1x128xf32> to vector<8x128xf32>
      %15 = arith.addf %12, %14 : vector<8x128xf32>
      %cst_13 = arith.constant 0.000000e+00 : f32
      %16 = vector.broadcast %cst_13 : f32 to vector<8x128xf32>
      %17 = arith.maximumf %15, %16 : vector<8x128xf32>
      %18 = arith.truncf %17 : vector<8x128xf32> to vector<8x128xbf16>
      %c0_14 = arith.constant 0 : index
      %c0_15 = arith.constant 0 : index
      %19 = vector.load %arg5[%c0_14, %c0_15] : memref<128x128xbf16, #tpu.memory_space<vmem>>, vector<128x128xbf16>
      %cst_16 = arith.constant dense<0.000000e+00> : vector<8x128xf32>
      %20 = tpu.matmul %18, %19, %cst_16 {dimension_numbers = #tpu.dot_dimension_numbers<[1], [0], [0], [1], [0, 0, 1, 1], [], []>} : vector<8x128xbf16>, vector<128x128xbf16>, vector<8x128xf32> -> vector<8x128xf32>
      %c0_17 = arith.constant 0 : index
      %c0_18 = arith.constant 0 : index
      %21 = vector.load %arg6[%c0_17, %c0_18] : memref<1x128xf32, #tpu.memory_space<vmem>>, vector<1x128xf32>
      %22 = vector.broadcast %21 : vector<1x128xf32> to vector<8x128xf32>
      %23 = arith.addf %20, %22 : vector<8x128xf32>
      %cst_19 = arith.constant 0.000000e+00 : f32
      %24 = vector.broadcast %cst_19 : f32 to vector<8x128xf32>
      %25 = arith.maximumf %23, %24 : vector<8x128xf32>
      %26 = arith.truncf %25 : vector<8x128xf32> to vector<8x128xbf16>
      %c0_20 = arith.constant 0 : index
      %c0_21 = arith.constant 0 : index
      %27 = vector.load %arg7[%c0_20, %c0_21] : memref<128x128xbf16, #tpu.memory_space<vmem>>, vector<128x128xbf16>
      %cst_22 = arith.constant dense<0.000000e+00> : vector<8x128xf32>
      %28 = tpu.matmul %26, %27, %cst_22 {dimension_numbers = #tpu.dot_dimension_numbers<[1], [0], [0], [1], [0, 0, 1, 1], [], []>} : vector<8x128xbf16>, vector<128x128xbf16>, vector<8x128xf32> -> vector<8x128xf32>
      %c0_23 = arith.constant 0 : index
      %c0_24 = arith.constant 0 : index
      %29 = vector.load %arg8[%c0_23, %c0_24] : memref<1x128xf32, #tpu.memory_space<vmem>>, vector<1x128xf32>
      %30 = vector.broadcast %29 : vector<1x128xf32> to vector<8x128xf32>
      %31 = arith.addf %28, %30 : vector<8x128xf32>
      %c0_25 = arith.constant 0 : index
      %c0_26 = arith.constant 0 : index
      %32 = vector.load %arg9[%c0_25, %c0_26] : memref<8x128xf32, #tpu.memory_space<vmem>>, vector<8x128xf32>
      tpu.vector_store %arg9[%c0_25, %c0_26], %31 {strides = array<i32>} : memref<8x128xf32, #tpu.memory_space<vmem>>, vector<8x128xf32>,
    } else {
    }
    return
  }
  func.func @transform_0(%arg0: i32, %arg1: i32) -> (i32, i32) {
    %c0_i32 = arith.constant 0 : i32
    return %arg0, %arg1 : i32, i32
  }
  func.func @transform_1(%arg0: i32, %arg1: i32) -> (i32, i32) {
    %c0_i32 = arith.constant 0 : i32
    %c0_i32_0 = arith.constant 0 : i32
    return %arg1, %c0_i32 : i32, i32
  }
  func.func @transform_2(%arg0: i32, %arg1: i32) -> (i32, i32) {
    %c0_i32 = arith.constant 0 : i32
    %c0_i32_0 = arith.constant 0 : i32
    %c0_i32_1 = arith.constant 0 : i32
    return %c0_i32, %c0_i32_0 : i32, i32
  }
  func.func @transform_3(%arg0: i32, %arg1: i32) -> (i32, i32) {
    %c0_i32 = arith.constant 0 : i32
    %c0_i32_0 = arith.constant 0 : i32
    %c0_i32_1 = arith.constant 0 : i32
    return %c0_i32, %c0_i32_0 : i32, i32
  }
  func.func @transform_4(%arg0: i32, %arg1: i32) -> (i32, i32) {
    %c0_i32 = arith.constant 0 : i32
    %c0_i32_0 = arith.constant 0 : i32
    %c0_i32_1 = arith.constant 0 : i32
    return %c0_i32, %c0_i32_0 : i32, i32
  }
  func.func @transform_5(%arg0: i32, %arg1: i32) -> (i32, i32) {
    %c0_i32 = arith.constant 0 : i32
    %c0_i32_0 = arith.constant 0 : i32
    %c0_i32_1 = arith.constant 0 : i32
    return %c0_i32, %c0_i32_0 : i32, i32
  }
  func.func @transform_6(%arg0: i32, %arg1: i32) -> (i32, i32) {
    %c0_i32 = arith.constant 0 : i32
    %c0_i32_0 = arith.constant 0 : i32
    %c0_i32_1 = arith.constant 0 : i32
    return %c0_i32, %c0_i32_0 : i32, i32
  }
  func.func @transform_7(%arg0: i32, %arg1: i32) -> (i32, i32) {
    %c0_i32 = arith.constant 0 : i32
    %c0_i32_0 = arith.constant 0 : i32
    return %arg0, %c0_i32 : i32, i32
  }
}

</mosaic_0001>

<llo_original>
// kernel: tpu_custom_call.1
$region0: #{tpu_custom_call.1}
  #allocation0 [shape = 'u32[]', space=smem, size = 0x4, offset = 0x4, fixed_abs, tag = 'smem constant byte address 0x4 - core index']
  #allocation1 [shape = 'u32[144,128]{1,0:T(1,128)}', space=vmem, size = 0x12000, scoped, tag = 'internal scratch']
  #allocation2 [shape = 'f32[8,128]{1,0:T(8,128)}', space=vmem, size = 0x1000, scoped, tag = 'scratch operand']
  %s0 = inlined_call_operand.hbm [shape: bf16[16,256], index: 0, kind: input, shape index: {}]
  %s1 = inlined_call_operand.hbm [shape: bf16[256,128], index: 1, kind: input, shape index: {}]
  %s2 = inlined_call_operand.vmem [shape: f32[1,128], index: 2, kind: input, shape index: {}]
  %s3 = inlined_call_operand.hbm [shape: bf16[128,128], index: 3, kind: input, shape index: {}]
  %s4 = inlined_call_operand.vmem [shape: f32[1,128], index: 4, kind: input, shape index: {}]
  %s5 = inlined_call_operand.hbm [shape: bf16[128,128], index: 5, kind: input, shape index: {}]
  %s6 = inlined_call_operand.vmem [shape: f32[1,128], index: 6, kind: input, shape index: {}]
  %s7 = inlined_call_operand.hbm [shape: f32[16,128], index: 7, kind: output, shape index: {}]
  %s8 = sld [smem:[#allocation0]]
  $region85: #{tpu_custom_call.1} parent=0
    _
  %s10 = ssub.s32 1, %s8
  %s11 = scalar_select 0, %s10, %s8
  $region1: #{tpu_custom_call.1} parent=0
    #allocation3 [shape = 'u8[4096]{0}', space=vmem, size = 0x1000, scoped, tag = 'input window, operand 0']
    #allocation4 [shape = 's32[2]{0}', space=sflag, size = 0x8, scoped, tag = 'scoped memory for tpu_custom_call.1']
    #allocation5 [shape = 's32[2]{0}', space=sflag, size = 0x8, scoped, tag = 'scoped memory for tpu_custom_call.1']
    #allocation6 [shape = 'u8[65536]{0}', space=vmem, size = 0x10000, scoped, tag = 'input window, operand 1']
    #allocation7 [shape = 's32[2]{0}', space=sflag, size = 0x8, scoped, tag = 'scoped memory for tpu_custom_call.1']
    #allocation8 [shape = 'u8[32768]{0}', space=vmem, size = 0x8000, scoped, tag = 'input window, operand 3, single buffered']
    #allocation9 [shape = 'u8[32768]{0}', space=vmem, size = 0x8000, scoped, tag = 'input window, operand 5, single buffered']
    #allocation10 [shape = 's32[1]{0}', space=sflag, size = 0x4, scoped, tag = 'scoped memory for tpu_custom_call.1']
    #allocation11 [shape = 'u8[8192]{0}', space=vmem, size = 0x2000, scoped, tag = 'output window, operand 0']
    %12 = vsyncpa [#allocation4], 0
    %s13 = scalar_lea.sflag [#allocation4], 1
    %14 = vsyncpa %s13, 0
    %15 = vsyncpa [#allocation7], 0
    %s16 = scalar_lea.sflag [#allocation7], 1
    %17 = vsyncpa %s16, 0
    %18 = vsyncpa [#allocation10], 0
    %19 = vsyncpa [#allocation5], 0
    %s20 = scalar_lea.sflag [#allocation5], 1
    %21 = vsyncpa %s20, 0
    loop: start=0, step=1, limit=6
    $region2: #{tpu_custom_call.1} parent=1 // loop_pre_header
      _
    $region3: #{tpu_custom_call.1} parent=1 // loop_header
      %s23 = sphi 0, %s27
      %p24 = scmp.ge.s32.totalorder %s23, 6
      %s30 = sphi 0, %s42
      %s31 = sphi 0, %s38
      %s32 = sphi 0, %s30
      %s33 = sphi 0, %s31
      %s34 = sphi 0, %s32
      %s35 = sphi 0, %s33
      %s47 = sphi 0, %s49
      %s50 = sphi 0, %s47
      %s51 = sphi 0, %s50
      %s67 = sphi 0, %s51
      %s73 = sphi 0, %s75
      %s76 = sphi 0, %s73
      %s77 = sphi 0, %s76
      %s93 = sphi 0, %s77
      %s97 = sphi 0, %s97
      %s99 = sphi 0, %s97
      %s100 = sphi 0, %s99
      %s114 = sphi 0, %s100
      %s118 = sphi 0, %s118
      %s120 = sphi 0, %s118
      %s121 = sphi 0, %s120
      %s135 = sphi 0, %s121
      %s139 = sphi 0, %s139
      %s141 = sphi 0, %s139
      %s142 = sphi 0, %s141
      %s156 = sphi 0, %s142
      %s160 = sphi 0, %s160
      %s162 = sphi 0, %s160
      %s163 = sphi 0, %s162
      %s177 = sphi 0, %s163
      %s181 = sphi 0, %s181
      %s183 = sphi 0, %s181
      %s184 = sphi 0, %s183
      %s198 = sphi 0, %s184
      %s204 = sphi 0, %s206
      %s207 = sphi 0, %s204
      %s208 = sphi 0, %s207
      %s224 = sphi 0, %s208
    $region4: #{tpu_custom_call.1} parent=1 // loop_header_branch
      %26 = sbr.rel (%p24) target = $region8
    $region5: #{tpu_custom_call.1} parent=1 // loop_body
      %s28 = ssub.s32 %s23, 1
      %s29 = ssub.s32 %s23, 2
      %s36 = sadd.s32 1, %s31
      %p37 = scmp.ge.s32.totalorder %s36, 2
      %s38 = scalar_select %p37, 0, %s36
      %s39 = sadd.s32 1, %s30
      %s40 = scalar_select %p37, %s39, %s30
      %p41 = scmp.ge.s32.totalorder %s40, 2
      %s42 = scalar_select %p41, 0, %s40
      %s43 = ssub.s32 %s30, %s42
      %s44 = ssub.s32 %s31, %s38
      %s45 = sor.u32 %s43, %s44
      %p46 = scmp.eq.s32.totalorder %s45, 0
      %s48 = sadd.s32 %s47, 1
      %s49 = scalar_select %p46, %s47, %s48
      %p52 = pneg %p46
      %p53 = scmp.eq.s32.totalorder %s23, 3
      %p54 = por %p52, %p53
      %p55 = scmp.ne.s32.totalorder %s47, %s50
      %p56 = scmp.eq.s32.totalorder %s23, 0
      %p57 = por %p55, %p56
      %p58 = scmp.ne.s32.totalorder %s47, %s50
      %p59 = scmp.eq.s32.totalorder %s28, 3
      %p60 = por %p58, %p59
      %p61 = scmp.ne.s32.totalorder %s50, %s51
      %p62 = scmp.eq.s32.totalorder %s28, 0
      %p63 = por %p61, %p62
      %p64 = scmp.ne.s32.totalorder %s50, %s51
      %p65 = scmp.eq.s32.totalorder %s29, 3
      %p66 = por %p64, %p65
      %p68 = scmp.ne.s32.totalorder %s51, %s67
      %p69 = scmp.eq.s32.totalorder %s29, 0
      %p70 = por %p68, %p69
      %s71 = ssub.s32 %s31, %s38
      %p72 = scmp.eq.s32.totalorder %s71, 0
      %s74 = sadd.s32 %s73, 1
      %s75 = scalar_select %p72, %s73, %s74
      %p78 = pneg %p72
      %p79 = scmp.eq.s32.totalorder %s23, 3
      %p80 = por %p78, %p79
      %p81 = scmp.ne.s32.totalorder %s73, %s76
      %p82 = scmp.eq.s32.totalorder %s23, 0
      %p83 = por %p81, %p82
      %p84 = scmp.ne.s32.totalorder %s73, %s76
      %p85 = scmp.eq.s32.totalorder %s28, 3
      %p86 = por %p84, %p85
      %p87 = scmp.ne.s32.totalorder %s76, %s77
      %p88 = scmp.eq.s32.totalorder %s28, 0
      %p89 = por %p87, %p88
      %p90 = scmp.ne.s32.totalorder %s76, %s77
      %p91 = scmp.eq.s32.totalorder %s29, 3
      %p92 = por %p90, %p91
      %p94 = scmp.ne.s32.totalorder %s77, %s93
      %p95 = scmp.eq.s32.totalorder %s29, 0
      %p96 = por %p94, %p95
      %s98 = sadd.s32 %s97, 1
      %p101 = scmp.eq.s32.totalorder %s23, 3
      %p102 = scmp.ne.s32.totalorder %s97, %s99
      %p103 = scmp.eq.s32.totalorder %s23, 0
      %p104 = por %p102, %p103
      %p105 = scmp.ne.s32.totalorder %s97, %s99
      %p106 = scmp.eq.s32.totalorder %s28, 3
      %p107 = por %p105, %p106
      %p108 = scmp.ne.s32.totalorder %s99, %s100
      %p109 = scmp.eq.s32.totalorder %s28, 0
      %p110 = por %p108, %p109
      %p111 = scmp.ne.s32.totalorder %s99, %s100
      %p112 = scmp.eq.s32.totalorder %s29, 3
      %p113 = por %p111, %p112
      %p115 = scmp.ne.s32.totalorder %s100, %s114
      %p116 = scmp.eq.s32.totalorder %s29, 0
      %p117 = por %p115, %p116
      %s119 = sadd.s32 %s118, 1
      %p122 = scmp.eq.s32.totalorder %s23, 3
      %p123 = scmp.ne.s32.totalorder %s118, %s120
      %p124 = scmp.eq.s32.totalorder %s23, 0
      %p125 = por %p123, %p124
      %p126 = scmp.ne.s32.totalorder %s118, %s120
      %p127 = scmp.eq.s32.totalorder %s28, 3
      %p128 = por %p126, %p127
      %p129 = scmp.ne.s32.totalorder %s120, %s121
      %p130 = scmp.eq.s32.totalorder %s28, 0
      %p131 = por %p129, %p130
      %p132 = scmp.ne.s32.totalorder %s120, %s121
      %p133 = scmp.eq.s32.totalorder %s29, 3
      %p134 = por %p132, %p133
      %p136 = scmp.ne.s32.totalorder %s121, %s135
      %p137 = scmp.eq.s32.totalorder %s29, 0
      %p138 = por %p136, %p137
      %s140 = sadd.s32 %s139, 1
      %p143 = scmp.eq.s32.totalorder %s23, 3
      %p144 = scmp.ne.s32.totalorder %s139, %s141
      %p145 = scmp.eq.s32.totalorder %s23, 0
      %p146 = por %p144, %p145
      %p147 = scmp.ne.s32.totalorder %s139, %s141
      %p148 = scmp.eq.s32.totalorder %s28, 3
      %p149 = por %p147, %p148
      %p150 = scmp.ne.s32.totalorder %s141, %s142
      %p151 = scmp.eq.s32.totalorder %s28, 0
      %p152 = por %p150, %p151
      %p153 = scmp.ne.s32.totalorder %s141, %s142
      %p154 = scmp.eq.s32.totalorder %s29, 3
      %p155 = por %p153, %p154
      %p157 = scmp.ne.s32.totalorder %s142, %s156
      %p158 = scmp.eq.s32.totalorder %s29, 0
      %p159 = por %p157, %p158
      %s161 = sadd.s32 %s160, 1
      %p164 = scmp.eq.s32.totalorder %s23, 3
      %p165 = scmp.ne.s32.totalorder %s160, %s162
      %p166 = scmp.eq.s32.totalorder %s23, 0
      %p167 = por %p165, %p166
      %p168 = scmp.ne.s32.totalorder %s160, %s162
      %p169 = scmp.eq.s32.totalorder %s28, 3
      %p170 = por %p168, %p169
      %p171 = scmp.ne.s32.totalorder %s162, %s163
      %p172 = scmp.eq.s32.totalorder %s28, 0
      %p173 = por %p171, %p172
      %p174 = scmp.ne.s32.totalorder %s162, %s163
      %p175 = scmp.eq.s32.totalorder %s29, 3
      %p176 = por %p174, %p175
      %p178 = scmp.ne.s32.totalorder %s163, %s177
      %p179 = scmp.eq.s32.totalorder %s29, 0
      %p180 = por %p178, %p179
      %s182 = sadd.s32 %s181, 1
      %p185 = scmp.eq.s32.totalorder %s23, 3
      %p186 = scmp.ne.s32.totalorder %s181, %s183
      %p187 = scmp.eq.s32.totalorder %s23, 0
      %p188 = por %p186, %p187
      %p189 = scmp.ne.s32.totalorder %s181, %s183
      %p190 = scmp.eq.s32.totalorder %s28, 3
      %p191 = por %p189, %p190
      %p192 = scmp.ne.s32.totalorder %s183, %s184
      %p193 = scmp.eq.s32.totalorder %s28, 0
      %p194 = por %p192, %p193
      %p195 = scmp.ne.s32.totalorder %s183, %s184
      %p196 = scmp.eq.s32.totalorder %s29, 3
      %p197 = por %p195, %p196
      %p199 = scmp.ne.s32.totalorder %s184, %s198
      %p200 = scmp.eq.s32.totalorder %s29, 0
      %p201 = por %p199, %p200
      %s202 = ssub.s32 %s30, %s42
      %p203 = scmp.eq.s32.totalorder %s202, 0
      %s205 = sadd.s32 %s204, 1
      %s206 = scalar_select %p203, %s204, %s205
      %p209 = pneg %p203
      %p210 = scmp.eq.s32.totalorder %s23, 3
      %p211 = por %p209, %p210
      %p212 = scmp.ne.s32.totalorder %s204, %s207
      %p213 = scmp.eq.s32.totalorder %s23, 0
      %p214 = por %p212, %p213
      %p215 = scmp.ne.s32.totalorder %s204, %s207
      %p216 = scmp.eq.s32.totalorder %s28, 3
      %p217 = por %p215, %p216
      %p218 = scmp.ne.s32.totalorder %s207, %s208
      %p219 = scmp.eq.s32.totalorder %s28, 0
      %p220 = por %p218, %p219
      %p221 = scmp.ne.s32.totalorder %s207, %s208
      %p222 = scmp.eq.s32.totalorder %s29, 3
      %p223 = por %p221, %p222
      %p225 = scmp.ne.s32.totalorder %s208, %s224
      %p226 = scmp.eq.s32.totalorder %s29, 0
      %p227 = por %p225, %p226
      %p228 = scmp.le.s32.totalorder 1, %s23
      %p229 = scmp.lt.s32.totalorder %s23, 5
      %p230 = pnand %p228, %p229
      %p231 = pneg %p230
      // Predicated region
      $region9: #{tpu_custom_call.1} parent=5 // pred_check
        _
      $region10: #{tpu_custom_call.1} parent=5 // pred_check_branch
        %233 = sbr.rel (%p230) target = $region12
      $region11: #{tpu_custom_call.1} parent=5 // pred_region
        %s234 = ssub.s32 %s23, 1
        // Predicated region
        $region13: #{tpu_custom_call.1} parent=11 // pred_check
          %p235 = pneg %p110
        $region14: #{tpu_custom_call.1} parent=11 // pred_check_branch
          %237 = sbr.rel (%p235) target = $region16
        $region15: #{tpu_custom_call.1} parent=11 // pred_region
          _
        $region16: #{tpu_custom_call.1} parent=11 // pred_fallthru
          _
        // Predicated region
        $region17: #{tpu_custom_call.1} parent=11 // pred_check
          %p238 = pneg %p131
        $region18: #{tpu_custom_call.1} parent=11 // pred_check_branch
          %240 = sbr.rel (%p238) target = $region20
        $region19: #{tpu_custom_call.1} parent=11 // pred_region
          %s242 = ssub.s32 1024, 1024
          %243 = vsyncadd [#allocation7], %s242
          %s244 = sshll.u32 [#allocation8], 4
          %s245 = int_to_ptr.vmem [resolvable:$true] %s244
          %250 = dma.hbm_to_vmem [thread:$0]  %s3, 1024, %s245, [#allocation7], 64, 64, 4
        $region20: #{tpu_custom_call.1} parent=11 // pred_fallthru
          _
        // Predicated region
        $region21: #{tpu_custom_call.1} parent=11 // pred_check
          %p251 = pneg %p152
        $region22: #{tpu_custom_call.1} parent=11 // pred_check_branch
          %253 = sbr.rel (%p251) target = $region24
        $region23: #{tpu_custom_call.1} parent=11 // pred_region
          _
        $region24: #{tpu_custom_call.1} parent=11 // pred_fallthru
          _
        // Predicated region
        $region25: #{tpu_custom_call.1} parent=11 // pred_check
          %p254 = pneg %p173
        $region26: #{tpu_custom_call.1} parent=11 // pred_check_branch
          %256 = sbr.rel (%p254) target = $region28
        $region27: #{tpu_custom_call.1} parent=11 // pred_region
          %s258 = ssub.s32 1024, 1024
          %259 = vsyncadd [#allocation10], %s258
          %s260 = sshll.u32 [#allocation9], 4
          %s261 = int_to_ptr.vmem [resolvable:$true] %s260
          %266 = dma.hbm_to_vmem [thread:$0]  %s5, 1024, %s261, [#allocation10], 64, 64, 4
        $region28: #{tpu_custom_call.1} parent=11 // pred_fallthru
          _
        // Predicated region
        $region29: #{tpu_custom_call.1} parent=11 // pred_check
          %p267 = pneg %p194
        $region30: #{tpu_custom_call.1} parent=11 // pred_check_branch
          %269 = sbr.rel (%p267) target = $region32
        $region31: #{tpu_custom_call.1} parent=11 // pred_region
          _
        $region32: #{tpu_custom_call.1} parent=11 // pred_fallthru
          _
      $region12: #{tpu_custom_call.1} parent=5 // pred_fallthru
        _
      %p270 = scmp.lt.s32.totalorder %s23, 4
      // Predicated region
      $region33: #{tpu_custom_call.1} parent=5 // pred_check
        %p271 = pneg %p270
      $region34: #{tpu_custom_call.1} parent=5 // pred_check_branch
        %273 = sbr.rel (%p271) target = $region36
      $region35: #{tpu_custom_call.1} parent=5 // pred_region
        // Predicated region
        $region37: #{tpu_custom_call.1} parent=35 // pred_check
          %p274 = pneg %p57
        $region38: #{tpu_custom_call.1} parent=35 // pred_check_branch
          %276 = sbr.rel (%p274) target = $region40
        $region39: #{tpu_custom_call.1} parent=35 // pred_region
          %s277 = sand.u32 %s47, 1
          %s278 = scalar_lea.sflag [#allocation4], %s277
          %s279 = sand.u32 %s47, 1
          %s280 = smul.addr %s279, 4
          %s281 = scalar_lea.vmem [#allocation3], %s280
          %s283 = ssub.s32 64, 64
          %284 = vsyncadd %s278, %s283
          %s285 = smul.addr %s30, 2
          %s286 = sadd.s32 %s31, %s285
          %s287 = smul.addr %s286, 64
          %s288 = scalar_lea.hbm %s0, %s287
          %s290 = sshll.u32 %s281, 4
          %s291 = int_to_ptr.vmem [resolvable:$true] %s290
          %293 = dma.hbm_to_vmem [thread:$0]  %s288, 64, %s291, %s278
        $region40: #{tpu_custom_call.1} parent=35 // pred_fallthru
          _
        // Predicated region
        $region41: #{tpu_custom_call.1} parent=35 // pred_check
          %p294 = pneg %p83
        $region42: #{tpu_custom_call.1} parent=35 // pred_check_branch
          %296 = sbr.rel (%p294) target = $region44
        $region43: #{tpu_custom_call.1} parent=35 // pred_region
          %s297 = sand.u32 %s23, 1
          %s298 = scalar_lea.sflag [#allocation7], %s297
          %s299 = sand.u32 %s73, 1
          %s300 = smul.addr %s299, 64
          %s301 = scalar_lea.vmem [#allocation6], %s300
          %s302 = smul.u32 16, %s31
          %s304 = ssub.s32 1024, 1024
          %305 = vsyncadd %s298, %s304
          %s306 = smul.addr %s302, 64
          %s307 = scalar_lea.hbm %s1, %s306
          %s308 = sshll.u32 %s301, 4
          %s309 = int_to_ptr.vmem [resolvable:$true] %s308
          %314 = dma.hbm_to_vmem [thread:$0]  %s307, 1024, %s309, %s298, 64, 64, 4
        $region44: #{tpu_custom_call.1} parent=35 // pred_fallthru
          _
      $region36: #{tpu_custom_call.1} parent=5 // pred_fallthru
        _
      %p315 = scmp.le.s32.totalorder 1, %s23
      %p316 = scmp.lt.s32.totalorder %s23, 5
      %p317 = pnand %p315, %p316
      %p318 = pneg %p317
      // Predicated region
      $region45: #{tpu_custom_call.1} parent=5 // pred_check
        _
      $region46: #{tpu_custom_call.1} parent=5 // pred_check_branch
        %320 = sbr.rel (%p317) target = $region48
      $region47: #{tpu_custom_call.1} parent=5 // pred_region
        %s321 = ssub.s32 %s23, 1
        %s322 = sand.u32 %s50, 1
        %s323 = scalar_lea.sflag [#allocation4], %s322
        %s324 = sand.u32 %s50, 1
        %s325 = smul.addr %s324, 4
        %s326 = scalar_lea.vmem [#allocation3], %s325
        // Predicated region
        $region49: #{tpu_custom_call.1} parent=47 // pred_check
          %p327 = pneg %p63
        $region50: #{tpu_custom_call.1} parent=47 // pred_check_branch
          %329 = sbr.rel (%p327) target = $region52
        $region51: #{tpu_custom_call.1} parent=47 // pred_region
          %330 = dma.done %s323, 64
        $region52: #{tpu_custom_call.1} parent=47 // pred_fallthru
          _
        %s331 = sand.u32 %s28, 1
        %s332 = scalar_lea.sflag [#allocation7], %s331
        %s333 = sand.u32 %s76, 1
        %s334 = smul.addr %s333, 64
        %s335 = scalar_lea.vmem [#allocation6], %s334
        // Predicated region
        $region53: #{tpu_custom_call.1} parent=47 // pred_check
          %p336 = pneg %p89
        $region54: #{tpu_custom_call.1} parent=47 // pred_check_branch
          %338 = sbr.rel (%p336) target = $region56
        $region55: #{tpu_custom_call.1} parent=47 // pred_region
          %339 = dma.done %s332, 1024
        $region56: #{tpu_custom_call.1} parent=47 // pred_fallthru
          _
        // Predicated region
        $region57: #{tpu_custom_call.1} parent=47 // pred_check
          %p340 = pneg %p131
        $region58: #{tpu_custom_call.1} parent=47 // pred_check_branch
          %342 = sbr.rel (%p340) target = $region60
        $region59: #{tpu_custom_call.1} parent=47 // pred_region
          %343 = dma.done [#allocation7], 1024
        $region60: #{tpu_custom_call.1} parent=47 // pred_fallthru
          _
        // Predicated region
        $region61: #{tpu_custom_call.1} parent=47 // pred_check
          %p344 = pneg %p173
        $region62: #{tpu_custom_call.1} parent=47 // pred_check_branch
          %346 = sbr.rel (%p344) target = $region64
        $region63: #{tpu_custom_call.1} parent=47 // pred_region
          %347 = dma.done [#allocation10], 1024
        $region64: #{tpu_custom_call.1} parent=47 // pred_fallthru
          _
        %s348 = sand.u32 %s50, 1
        %s349 = scalar_lea.sflag [#allocation4], %s348
        %s350 = sand.u32 %s50, 1
        %s351 = smul.addr %s350, 4
        %s352 = scalar_lea.vmem [#allocation3], %s351
        %p353 = pneg %p63
        %p354 = pneg %p60
        %s355 = sand.u32 %s28, 1
        %s356 = scalar_lea.sflag [#allocation7], %s355
        %s357 = sand.u32 %s76, 1
        %s358 = smul.addr %s357, 64
        %s359 = scalar_lea.vmem [#allocation6], %s358
        %p360 = pneg %p89
        %p361 = pneg %p86
        %p362 = pneg %p110
        %p363 = pneg %p107
        %p364 = pneg %p131
        %p365 = pneg %p128
        %p366 = pneg %p152
        %p367 = pneg %p149
        %p368 = pneg %p173
        %p369 = pneg %p170
        %p370 = pneg %p194
        %p371 = pneg %p191
        %p372 = pneg %p220
        %p373 = pneg %p217
        %s374 = sand.u32 %s207, 1
        %s375 = scalar_lea.sflag [#allocation5], %s374
        %s376 = sand.u32 %s207, 1
        %s377 = smul.addr %s376, 8
        %s378 = scalar_lea.vmem [#allocation11], %s377
        %s379 = smul.u32 16, %s33
        %p381 = scmp.eq.s32.totalorder %s33, 0
        // Predicated region
        $region65: #{tpu_custom_call.1} parent=47 // pred_check
          %p382 = pneg %p381
        $region66: #{tpu_custom_call.1} parent=47 // pred_check_branch
          %384 = sbr.rel (%p382) target = $region68
        $region67: #{tpu_custom_call.1} parent=47 // pred_region
          %385 = vst [vmem:[#allocation2] sm:$0xff] 0.0
        $region68: #{tpu_custom_call.1} parent=47 // pred_fallthru
          _
        %v386 = vld [vmem:[#allocation2] sm:$0xff]
        %v387 = vld [vmem:[%s326] sm:$0xf]
        %v388 = vld [vmem:[%s335] sm:$0xf]
        %v389 = vld [vmem:[%s335 + $0x4] sm:$0xf]
        %v390 = vld [vmem:[%s335 + $0x8] sm:$0xf]
        %v391 = vld [vmem:[%s335 + $0xc] sm:$0xf]
        %v392 = vld [vmem:[%s335 + $0x10] sm:$0xf]
        %v393 = vld [vmem:[%s335 + $0x14] sm:$0xf]
        %v394 = vld [vmem:[%s335 + $0x18] sm:$0xf]
        %v395 = vld [vmem:[%s335 + $0x1c] sm:$0xf]
        %v396 = vld [vmem:[%s335 + $0x20] sm:$0xf]
        %v397 = vld [vmem:[%s335 + $0x24] sm:$0xf]
        %v398 = vld [vmem:[%s335 + $0x28] sm:$0xf]
        %v399 = vld [vmem:[%s335 + $0x2c] sm:$0xf]
        %v400 = vld [vmem:[%s335 + $0x30] sm:$0xf]
        %v401 = vld [vmem:[%s335 + $0x34] sm:$0xf]
        %v402 = vld [vmem:[%s335 + $0x38] sm:$0xf]
        %v403 = vld [vmem:[%s335 + $0x3c] sm:$0xf]
        %v420 = vunpack.c.l.b16 %v388
        %v421 = vunpack.c.l.b16 %v389
        %v422 = vunpack.c.l.b16 %v390
        %v423 = vunpack.c.l.b16 %v391
        %v424 = vunpack.c.l.b16 %v392
        %v425 = vunpack.c.l.b16 %v393
        %v426 = vunpack.c.l.b16 %v394
        %v427 = vunpack.c.l.b16 %v395
        %v428 = vunpack.c.l.b16 %v396
        %v429 = vunpack.c.l.b16 %v397
        %v430 = vunpack.c.l.b16 %v398
        %v431 = vunpack.c.l.b16 %v399
        %v432 = vunpack.c.l.b16 %v400
        %v433 = vunpack.c.l.b16 %v401
        %v434 = vunpack.c.l.b16 %v402
        %v435 = vunpack.c.l.b16 %v403
        %v436 = vpack.c.b16 %v421, %v420
        %v437 = vpack.c.b16 %v423, %v422
        %v438 = vpack.c.b16 %v425, %v424
        %v439 = vpack.c.b16 %v427, %v426
        %v440 = vpack.c.b16 %v429, %v428
        %v441 = vpack.c.b16 %v431, %v430
        %v442 = vpack.c.b16 %v433, %v432
        %v443 = vpack.c.b16 %v435, %v434
        %452 = vmatprep.subr.bf16.mxu0 0
        %453 = vmatpush1.bf16.msra.mxu0 %v436
        %454 = vmatprep.subr.bf16.mxu0 0
        %455 = vmatpush1.bf16.msra.mxu0 %v437
        %456 = vmatprep.subr.bf16.mxu0 0
        %457 = vmatpush1.bf16.msra.mxu0 %v438
        %458 = vmatprep.subr.bf16.mxu0 0
        %459 = vmatpush1.bf16.msra.mxu0 %v439
        %460 = vmatprep.subr.bf16.mxu0 0
        %461 = vmatpush1.bf16.msra.mxu0 %v440
        %462 = vmatprep.subr.bf16.mxu0 0
        %463 = vmatpush1.bf16.msra.mxu0 %v441
        %464 = vmatprep.subr.bf16.mxu0 0
        %465 = vmatpush1.bf16.msra.mxu0 %v442
        %466 = vmatprep.subr.bf16.mxu0 0
        %467 = vmatpush1.bf16.msra.mxu0 %v443
        %468 = vmatprep.subr.bf16.mxu0 0
        %469 = vmatpush1.bf16.msra.mxu0 0
        %470 = vmatprep.subr.bf16.mxu0 0
        %471 = vmatpush1.bf16.msra.mxu0 0
        %472 = vmatprep.subr.bf16.mxu0 0
        %473 = vmatpush1.bf16.msra.mxu0 0
        %474 = vmatprep.subr.bf16.mxu0 0
        %475 = vmatpush1.bf16.msra.mxu0 0
        %476 = vmatprep.subr.bf16.mxu0 0
        %477 = vmatpush1.bf16.msra.mxu0 0
        %478 = vmatprep.subr.bf16.mxu0 0
        %479 = vmatpush1.bf16.msra.mxu0 0
        %480 = vmatprep.subr.bf16.mxu0 0
        %481 = vmatpush1.bf16.msra.mxu0 0
        %482 = vmatprep.subr.bf16.mxu0 0
        %483 = vmatpush1.bf16.msra.mxu0 0
        %484 = vmatprep.mubr.bf16.mxu0 0
        %485 = vmatmul.mubr.bf16.gmra.mrb[0].mxu0 %v387
        %v486 = vpop.f32.mrb[0].mxu0
        %v487 = vadd.f32 0.0, %v486
        %v488 = vpop.f32.mrb[0].mxu0
        %v489 = vpop.f32.mrb[0].mxu0
        %v490 = vpop.f32.mrb[0].mxu0
        %491 = vdwg.mxu0
        %v492 = vadd.f32 %v386, %v487
        %493 = vst [vmem:[#allocation2] sm:$0xff] %v492
        %p494 = scmp.eq.s32.totalorder %s33, 1
        // Predicated region
        $region69: #{tpu_custom_call.1} parent=47 // pred_check
          %p495 = pneg %p494
        $region70: #{tpu_custom_call.1} parent=47 // pred_check_branch
          %497 = sbr.rel (%p495) target = $region72
        $region71: #{tpu_custom_call.1} parent=47 // pred_region
          %v498 = vld [vmem:[#allocation2] sm:$0xff]
          %v499 = vld [vmem:[%s2] sm:$0x1]
          %v501 = vlaneseq
          %v502 = vshrl.u32 %v501, 7
          %v503 = vsub.s32 0, %v502
          %v504 = vrot.slane %v499, %v503
          %v506 = vadd.f32 %v498, %v504
          %v507 = vmax.f32 %v506, 0.0
          %v508 = vpack.c.bf16 %v507, %v507
          %v509 = vld [vmem:[#allocation8] sm:$0xf]
          %v510 = vld [vmem:[#allocation8 + $0x4] sm:$0xf]
          %v511 = vld [vmem:[#allocation8 + $0x8] sm:$0xf]
          %v512 = vld [vmem:[#allocation8 + $0xc] sm:$0xf]
          %v513 = vld [vmem:[#allocation8 + $0x10] sm:$0xf]
          %v514 = vld [vmem:[#allocation8 + $0x14] sm:$0xf]
          %v515 = vld [vmem:[#allocation8 + $0x18] sm:$0xf]
          %v516 = vld [vmem:[#allocation8 + $0x1c] sm:$0xf]
          %v517 = vld [vmem:[#allocation8 + $0x20] sm:$0xf]
          %v518 = vld [vmem:[#allocation8 + $0x24] sm:$0xf]
          %v519 = vld [vmem:[#allocation8 + $0x28] sm:$0xf]
          %v520 = vld [vmem:[#allocation8 + $0x2c] sm:$0xf]
          %v521 = vld [vmem:[#allocation8 + $0x30] sm:$0xf]
          %v522 = vld [vmem:[#allocation8 + $0x34] sm:$0xf]
          %v523 = vld [vmem:[#allocation8 + $0x38] sm:$0xf]
          %v524 = vld [vmem:[#allocation8 + $0x3c] sm:$0xf]
          %v525 = vld [vmem:[%s4] sm:$0x1]
          %v527 = vlaneseq
          %v528 = vshrl.u32 %v527, 7
          %v529 = vsub.s32 0, %v528
          %v530 = vrot.slane %v525, %v529
          %v548 = vunpack.c.l.b16 %v509
          %v549 = vunpack.c.l.b16 %v510
          %v550 = vunpack.c.l.b16 %v511
          %v551 = vunpack.c.l.b16 %v512
          %v552 = vunpack.c.l.b16 %v513
          %v553 = vunpack.c.l.b16 %v514
          %v554 = vunpack.c.l.b16 %v515
          %v555 = vunpack.c.l.b16 %v516
          %v556 = vunpack.c.l.b16 %v517
          %v557 = vunpack.c.l.b16 %v518
          %v558 = vunpack.c.l.b16 %v519
          %v559 = vunpack.c.l.b16 %v520
          %v560 = vunpack.c.l.b16 %v521
          %v561 = vunpack.c.l.b16 %v522
          %v562 = vunpack.c.l.b16 %v523
          %v563 = vunpack.c.l.b16 %v524
          %v564 = vpack.c.b16 %v549, %v548
          %v565 = vpack.c.b16 %v551, %v550
          %v566 = vpack.c.b16 %v553, %v552
          %v567 = vpack.c.b16 %v555, %v554
          %v568 = vpack.c.b16 %v557, %v556
          %v569 = vpack.c.b16 %v559, %v558
          %v570 = vpack.c.b16 %v561, %v560
          %v571 = vpack.c.b16 %v563, %v562
          %580 = vmatprep.subr.bf16.mxu0 0
          %581 = vmatpush1.bf16.msra.mxu0 %v564
          %582 = vmatprep.subr.bf16.mxu0 0
          %583 = vmatpush1.bf16.msra.mxu0 %v565
          %584 = vmatprep.subr.bf16.mxu0 0
          %585 = vmatpush1.bf16.msra.mxu0 %v566
          %586 = vmatprep.subr.bf16.mxu0 0
          %587 = vmatpush1.bf16.msra.mxu0 %v567
          %588 = vmatprep.subr.bf16.mxu0 0
          %589 = vmatpush1.bf16.msra.mxu0 %v568
          %590 = vmatprep.subr.bf16.mxu0 0
          %591 = vmatpush1.bf16.msra.mxu0 %v569
          %592 = vmatprep.subr.bf16.mxu0 0
          %593 = vmatpush1.bf16.msra.mxu0 %v570
          %594 = vmatprep.subr.bf16.mxu0 0
          %595 = vmatpush1.bf16.msra.mxu0 %v571
          %596 = vmatprep.subr.bf16.mxu0 0
          %597 = vmatpush1.bf16.msra.mxu0 0
          %598 = vmatprep.subr.bf16.mxu0 0
          %599 = vmatpush1.bf16.msra.mxu0 0
          %600 = vmatprep.subr.bf16.mxu0 0
          %601 = vmatpush1.bf16.msra.mxu0 0
          %602 = vmatprep.subr.bf16.mxu0 0
          %603 = vmatpush1.bf16.msra.mxu0 0
          %604 = vmatprep.subr.bf16.mxu0 0
          %605 = vmatpush1.bf16.msra.mxu0 0
          %606 = vmatprep.subr.bf16.mxu0 0
          %607 = vmatpush1.bf16.msra.mxu0 0
          %608 = vmatprep.subr.bf16.mxu0 0
          %609 = vmatpush1.bf16.msra.mxu0 0
          %610 = vmatprep.subr.bf16.mxu0 0
          %611 = vmatpush1.bf16.msra.mxu0 0
          %612 = vmatprep.mubr.bf16.mxu0 0
          %613 = vmatmul.mubr.bf16.gmra.mrb[0].mxu0 %v508
          %v614 = vpop.f32.mrb[0].mxu0
          %v615 = vadd.f32 %v530, %v614
          %v616 = vpop.f32.mrb[0].mxu0
          %v617 = vpop.f32.mrb[0].mxu0
          %v618 = vpop.f32.mrb[0].mxu0
          %619 = vdwg.mxu0
          %v620 = vmax.f32 %v615, 0.0
          %v621 = vpack.c.bf16 %v620, %v620
          %v622 = vld [vmem:[#allocation9] sm:$0xf]
          %v623 = vld [vmem:[#allocation9 + $0x4] sm:$0xf]
          %v624 = vld [vmem:[#allocation9 + $0x8] sm:$0xf]
          %v625 = vld [vmem:[#allocation9 + $0xc] sm:$0xf]
          %v626 = vld [vmem:[#allocation9 + $0x10] sm:$0xf]
          %v627 = vld [vmem:[#allocation9 + $0x14] sm:$0xf]
          %v628 = vld [vmem:[#allocation9 + $0x18] sm:$0xf]
          %v629 = vld [vmem:[#allocation9 + $0x1c] sm:$0xf]
          %v630 = vld [vmem:[#allocation9 + $0x20] sm:$0xf]
          %v631 = vld [vmem:[#allocation9 + $0x24] sm:$0xf]
          %v632 = vld [vmem:[#allocation9 + $0x28] sm:$0xf]
          %v633 = vld [vmem:[#allocation9 + $0x2c] sm:$0xf]
          %v634 = vld [vmem:[#allocation9 + $0x30] sm:$0xf]
          %v635 = vld [vmem:[#allocation9 + $0x34] sm:$0xf]
          %v636 = vld [vmem:[#allocation9 + $0x38] sm:$0xf]
          %v637 = vld [vmem:[#allocation9 + $0x3c] sm:$0xf]
          %v638 = vld [vmem:[%s6] sm:$0x1]
          %v640 = vlaneseq
          %v641 = vshrl.u32 %v640, 7
          %v642 = vsub.s32 0, %v641
          %v643 = vrot.slane %v638, %v642
          %v661 = vunpack.c.l.b16 %v622
          %v662 = vunpack.c.l.b16 %v623
          %v663 = vunpack.c.l.b16 %v624
          %v664 = vunpack.c.l.b16 %v625
          %v665 = vunpack.c.l.b16 %v626
          %v666 = vunpack.c.l.b16 %v627
          %v667 = vunpack.c.l.b16 %v628
          %v668 = vunpack.c.l.b16 %v629
          %v669 = vunpack.c.l.b16 %v630
          %v670 = vunpack.c.l.b16 %v631
          %v671 = vunpack.c.l.b16 %v632
          %v672 = vunpack.c.l.b16 %v633
          %v673 = vunpack.c.l.b16 %v634
          %v674 = vunpack.c.l.b16 %v635
          %v675 = vunpack.c.l.b16 %v636
          %v676 = vunpack.c.l.b16 %v637
          %v677 = vpack.c.b16 %v662, %v661
          %v678 = vpack.c.b16 %v664, %v663
          %v679 = vpack.c.b16 %v666, %v665
          %v680 = vpack.c.b16 %v668, %v667
          %v681 = vpack.c.b16 %v670, %v669
          %v682 = vpack.c.b16 %v672, %v671
          %v683 = vpack.c.b16 %v674, %v673
          %v684 = vpack.c.b16 %v676, %v675
          %693 = vmatprep.subr.bf16.mxu0 0
          %694 = vmatpush1.bf16.msra.mxu0 %v677
          %695 = vmatprep.subr.bf16.mxu0 0
          %696 = vmatpush1.bf16.msra.mxu0 %v678
          %697 = vmatprep.subr.bf16.mxu0 0
          %698 = vmatpush1.bf16.msra.mxu0 %v679
          %699 = vmatprep.subr.bf16.mxu0 0
          %700 = vmatpush1.bf16.msra.mxu0 %v680
          %701 = vmatprep.subr.bf16.mxu0 0
          %702 = vmatpush1.bf16.msra.mxu0 %v681
          %703 = vmatprep.subr.bf16.mxu0 0
          %704 = vmatpush1.bf16.msra.mxu0 %v682
          %705 = vmatprep.subr.bf16.mxu0 0
          %706 = vmatpush1.bf16.msra.mxu0 %v683
          %707 = vmatprep.subr.bf16.mxu0 0
          %708 = vmatpush1.bf16.msra.mxu0 %v684
          %709 = vmatprep.subr.bf16.mxu0 0
          %710 = vmatpush1.bf16.msra.mxu0 0
          %711 = vmatprep.subr.bf16.mxu0 0
          %712 = vmatpush1.bf16.msra.mxu0 0
          %713 = vmatprep.subr.bf16.mxu0 0
          %714 = vmatpush1.bf16.msra.mxu0 0
          %715 = vmatprep.subr.bf16.mxu0 0
          %716 = vmatpush1.bf16.msra.mxu0 0
          %717 = vmatprep.subr.bf16.mxu0 0
          %718 = vmatpush1.bf16.msra.mxu0 0
          %719 = vmatprep.subr.bf16.mxu0 0
          %720 = vmatpush1.bf16.msra.mxu0 0
          %721 = vmatprep.subr.bf16.mxu0 0
          %722 = vmatpush1.bf16.msra.mxu0 0
          %723 = vmatprep.subr.bf16.mxu0 0
          %724 = vmatpush1.bf16.msra.mxu0 0
          %725 = vmatprep.mubr.bf16.mxu0 0
          %726 = vmatmul.mubr.bf16.gmra.mrb[0].mxu0 %v621
          %v727 = vpop.f32.mrb[0].mxu0
          %v728 = vadd.f32 %v643, %v727
          %v729 = vpop.f32.mrb[0].mxu0
          %v730 = vpop.f32.mrb[0].mxu0
          %v731 = vpop.f32.mrb[0].mxu0
          %732 = vdwg.mxu0
          %733 = vst [vmem:[%s378] sm:$0xff] %v728
        $region72: #{tpu_custom_call.1} parent=47 // pred_fallthru
          _
        %s734 = sand.u32 %s207, 1
        %s735 = scalar_lea.sflag [#allocation5], %s734
        %s736 = sand.u32 %s207, 1
        %s737 = smul.addr %s736, 8
        %s738 = scalar_lea.vmem [#allocation11], %s737
        // Predicated region
        $region73: #{tpu_custom_call.1} parent=47 // pred_check
          %p739 = pneg %p217
        $region74: #{tpu_custom_call.1} parent=47 // pred_check_branch
          %741 = sbr.rel (%p739) target = $region76
        $region75: #{tpu_custom_call.1} parent=47 // pred_region
          %s743 = ssub.s32 128, 128
          %744 = vsyncadd %s735, %s743
          %s745 = smul.addr %s32, 128
          %s746 = scalar_lea.hbm %s7, %s745
          %s748 = sshll.u32 %s738, 4
          %s749 = int_to_ptr.vmem [resolvable:$true] %s748
          %751 = dma.vmem_to_hbm [thread:$0]  %s749, 128, %s746, %s735
        $region76: #{tpu_custom_call.1} parent=47 // pred_fallthru
          _
      $region48: #{tpu_custom_call.1} parent=5 // pred_fallthru
        _
      %p752 = scmp.le.s32.totalorder 2, %s23
      // Predicated region
      $region77: #{tpu_custom_call.1} parent=5 // pred_check
        %p753 = pneg %p752
      $region78: #{tpu_custom_call.1} parent=5 // pred_check_branch
        %755 = sbr.rel (%p753) target = $region80
      $region79: #{tpu_custom_call.1} parent=5 // pred_region
        %s756 = ssub.s32 %s23, 2
        // Predicated region
        $region81: #{tpu_custom_call.1} parent=79 // pred_check
          %p757 = pneg %p223
        $region82: #{tpu_custom_call.1} parent=79 // pred_check_branch
          %759 = sbr.rel (%p757) target = $region84
        $region83: #{tpu_custom_call.1} parent=79 // pred_region
          %s760 = sand.u32 %s208, 1
          %s761 = scalar_lea.sflag [#allocation5], %s760
          %s762 = sand.u32 %s208, 1
          %s763 = smul.addr %s762, 8
          %s764 = scalar_lea.vmem [#allocation11], %s763
          %765 = dma.done %s761, 128
        $region84: #{tpu_custom_call.1} parent=79 // pred_fallthru
          _
      $region80: #{tpu_custom_call.1} parent=5 // pred_fallthru
        _
    $region6: #{tpu_custom_call.1} parent=1 // loop_footer
      %s27 = sadd.s32 1, %s23
    $region7: #{tpu_custom_call.1} parent=1 // loop_footer_branch
      %22 = sbr.rel target = $region3
    $region8: #{tpu_custom_call.1} parent=1 // loop_exit
      _
    %766 = vsyncpa [#allocation4], 1
    %s767 = scalar_lea.sflag [#allocation4], 1
    %768 = vsyncpa %s767, 1
    %769 = vsyncpa [#allocation7], 1
    %s770 = scalar_lea.sflag [#allocation7], 1
    %771 = vsyncpa %s770, 1
    %772 = vsyncpa [#allocation10], 1
    %773 = vsyncpa [#allocation5], 1
    %s774 = scalar_lea.sflag [#allocation5], 1
    %775 = vsyncpa %s774, 1

</llo_original>
